<compile_context>
chip_gen: v7x
topology: tpu7x:2x2x1
jax: 0.10.0
libtpu: 0.0.40
codegen_flags: <defaults>
</compile_context>

<pallas_src>
import functools

import jax
import jax.numpy as jnp
from jax.experimental import pallas as pl
from jax.experimental.pallas import tpu as pltpu


# ----------------------------------------------------------------------------
# Pallas kernel
# ----------------------------------------------------------------------------
def _multitask_loss_kernel(cat_logits_ref, typ_logits_ref,
                           attr_logits_ref, attr_tgt_ref,
                           small_ref, cw_ref,
                           out_ref, acc_ref,
                           *, batch):
    c = pl.program_id(0)            # core-parallel slice
    k = pl.program_id(1)            # batch tile (reduction axis)
    npc = pl.num_programs(1)
    tb = cat_logits_ref.shape[0]

    # ---- init accumulator on the first tile of this core slice -------------
    @pl.when(k == 0)
    def _():
        acc_ref[...] = jnp.zeros_like(acc_ref)

    # Logical (unclamped) tile index -> row validity.  Handles the partial
    # last tile and any phantom tiles introduced by the core split; OOB rows
    # are removed with jnp.where (select) so garbage/NaN cannot propagate.
    tile = c * npc + k
    row = tile * tb + jax.lax.broadcasted_iota(jnp.int32, (tb, 1), 0)
    valid = row < batch                                            # (tb,1)

    # merged tiny per-row inputs: [cat_label, type_label, comp_pred, comp_tgt]
    small = small_ref[...].astype(jnp.float32)                     # (tb,4)
    cat_lab = small[:, 0:1].astype(jnp.int32)
    typ_lab = small[:, 1:2].astype(jnp.int32)
    comp_p = small[:, 2:3]
    comp_t = small[:, 3:4]

    def ce_nll(logits, lab_col):
        """Per-row -log softmax(logits)[label]; labels one-hot'd in kernel."""
        lane = jax.lax.broadcasted_iota(jnp.int32, logits.shape, 1)
        m = jnp.max(logits, axis=-1, keepdims=True)
        lse = m + jnp.log(jnp.sum(jnp.exp(logits - m), axis=-1, keepdims=True))
        onehot = (lane == lab_col).astype(jnp.float32)
        x_y = jnp.sum(logits * onehot, axis=-1, keepdims=True)
        return lse - x_y, onehot                                   # (tb,1),(tb,C)

    # ---- 1) weighted category cross-entropy (46 classes) -------------------
    nll_c, onehot_c = ce_nll(cat_logits_ref[...].astype(jnp.float32), cat_lab)
    w_i = jnp.sum(onehot_c * cw_ref[...], axis=-1, keepdims=True)
    cat_num = jnp.where(valid, w_i * nll_c, 0.0)
    cat_den = jnp.where(valid, w_i, 0.0)

    # ---- 2) category-type cross-entropy (unweighted mean) ------------------
    nll_t, _ = ce_nll(typ_logits_ref[...].astype(jnp.float32), typ_lab)
    typ_s = jnp.where(valid, nll_t, 0.0)

    # ---- 3) attribute BCE-with-logits (stable form) ------------------------
    z = attr_logits_ref[...].astype(jnp.float32)
    t = attr_tgt_ref[...].astype(jnp.float32)
    bce = jnp.maximum(z, 0.0) - z * t + jnp.log1p(jnp.exp(-jnp.abs(z)))
    attr_s = jnp.where(valid, jnp.sum(bce, axis=-1, keepdims=True), 0.0)

    # ---- 4) compatibility squared error -------------------------------------
    d = comp_p - comp_t
    comp_s = jnp.where(valid, d * d, 0.0)

    # ---- accumulate the 5 partial sums into lanes 0..4 of one scratch ------
    lane_o = jax.lax.broadcasted_iota(jnp.int32, acc_ref.shape, 1)  # (1,128)
    acc_ref[...] += (
        jnp.where(lane_o == 0, jnp.sum(cat_num, keepdims=True), 0.0)
        + jnp.where(lane_o == 1, jnp.sum(cat_den, keepdims=True), 0.0)
        + jnp.where(lane_o == 2, jnp.sum(typ_s, keepdims=True), 0.0)
        + jnp.where(lane_o == 3, jnp.sum(attr_s, keepdims=True), 0.0)
        + jnp.where(lane_o == 4, jnp.sum(comp_s, keepdims=True), 0.0))

    # ---- flush this core's partial sums on its last tile -------------------
    @pl.when(k == npc - 1)
    def _():
        out_ref[...] = acc_ref[...]


# ----------------------------------------------------------------------------
# Wrapper
# ----------------------------------------------------------------------------
def _round_up(x, m):
    return ((x + m - 1) // m) * m


def _choose_tile(B, nC, nT, nA, sublane, vmem_budget=24 * 1024 * 1024):
    """Largest batch tile whose double-buffered input blocks fit the budget."""
    lane_pad = lambda n: _round_up(max(n, 1), 128)
    # f32 upper bound for bytes/row across all lane-padded input blocks
    row_bytes = 4 * (lane_pad(nC) + lane_pad(nT) + 2 * lane_pad(nA) + lane_pad(4))
    tb = vmem_budget // (2 * row_bytes)
    tb = max(sublane, (tb // sublane) * sublane)
    tb = min(tb, 2048)                       # diminishing returns past ~2K rows
    tb = min(tb, _round_up(B, sublane))      # never bigger than the batch
    return tb


def fashion_multitask_loss(outputs, targets,
                           category_weight=1.0, category_type_weight=0.5,
                           attribute_weight=0.3, compatibility_weight=0.2):
    cat_logits = outputs["category_logits"]          # dtype kept (f32 or bf16)
    typ_logits = outputs["category_type_logits"]
    attr_logits = outputs["attribute_preds"]
    attr_tgt = targets["attribute_targets"]

    B, nC = cat_logits.shape
    nT = typ_logits.shape[1]
    nA = attr_logits.shape[1]

    cat_lab = targets["category_labels"].reshape(B).astype(jnp.float32)
    typ_lab = targets["category_type_labels"].reshape(B).astype(jnp.float32)
    if "compatibility_score" in outputs:
        comp_p = outputs["compatibility_score"].reshape(B).astype(jnp.float32)
        comp_t = targets["compatibility_targets"].reshape(B).astype(jnp.float32)
    else:  # module returns 0 compatibility loss; MSE(0,0)=0 gives the same
        comp_p = jnp.zeros((B,), jnp.float32)
        comp_t = jnp.zeros((B,), jnp.float32)
    # four tiny per-row scalars merged into one (B,4) input -> one DMA per tile
    small = jnp.stack([cat_lab, typ_lab, comp_p, comp_t], axis=1)

    # class weights exactly as the module: ones(46), weight[45] = 50
    class_weights = jnp.ones((1, nC), jnp.float32)
    if nC > 45:
        class_weights = class_weights.at[0, 45].set(50.0)

    bf16_in = any(x.dtype == jnp.bfloat16
                  for x in (cat_logits, typ_logits, attr_logits, attr_tgt))
    sublane = 16 if bf16_in else 8
    TB = _choose_tile(B, nC, nT, nA, sublane)

    nb_total = pl.cdiv(B, TB)
    NC = 2 if nb_total >= 2 else 1          # split across TCs on dual-core chips
    npc = pl.cdiv(nb_total, NC)
    last_tile = nb_total - 1

    def row_map(c, k):
        # clamp so phantom tiles of the core split never index out of bounds;
        # the kernel masks them out via the unclamped row index.
        return (jnp.minimum(c * npc + k, last_tile), 0)

    kernel = functools.partial(_multitask_loss_kernel, batch=B)

    partials = pl.pallas_call(
        kernel,
        out_shape=jax.ShapeDtypeStruct((NC, 128), jnp.float32),
        grid_spec=pltpu.PrefetchScalarGridSpec(
            num_scalar_prefetch=0,
            grid=(NC, npc),
            in_specs=[
                pl.BlockSpec((TB, nC), row_map),                 # category logits
                pl.BlockSpec((TB, nT), row_map),                 # type logits
                pl.BlockSpec((TB, nA), row_map),                 # attribute logits
                pl.BlockSpec((TB, nA), row_map),                 # attribute targets
                pl.BlockSpec((TB, 4), row_map),                  # merged small inputs
                pl.BlockSpec((1, nC), lambda c, k: (0, 0)),      # class weights (resident)
            ],
            out_specs=pl.BlockSpec((1, 128), lambda c, k: (c, 0)),
            scratch_shapes=[pltpu.VMEM((1, 128), jnp.float32)],
        ),
        compiler_params=pltpu.CompilerParams(
            dimension_semantics=("parallel", "arbitrary")),
    )(cat_logits, typ_logits, attr_logits, attr_tgt, small, class_weights)

    # Tiny final math (divisions + task weighting) on the per-core partial sums.
    sums = jnp.sum(partials.astype(jnp.float32), axis=0)          # (128,)
    cat_loss = sums[0] / sums[1]
    typ_loss = sums[2] / B
    attr_loss = sums[3] / (B * nA)
    comp_loss = sums[4] / B
    total = (category_weight * cat_loss + category_type_weight * typ_loss
             + attribute_weight * attr_loss + compatibility_weight * comp_loss)

    loss_details = {
        "total_loss": total,
        "category_loss": cat_loss,
        "category_type_loss": typ_loss,
        "attribute_loss": attr_loss,
        "compatibility_loss": comp_loss,
    }
    return total, loss_details


# ----------------------------------------------------------------------------
# Pure-JAX reference (correctness check only)
# ----------------------------------------------------------------------------
def _reference_loss(outputs, targets, w_cat=1.0, w_typ=0.5, w_attr=0.3, w_comp=0.2):
    cat_logits = outputs["category_logits"].astype(jnp.float32)
    cat_labels = targets["category_labels"]
    nC = cat_logits.shape[1]
    class_weights = jnp.ones((nC,), jnp.float32).at[45].set(50.0)
    logp = jax.nn.log_softmax(cat_logits, axis=-1)
    nll = -jnp.take_along_axis(logp, cat_labels[:, None], axis=-1)[:, 0]
    w = class_weights[cat_labels]
    cat_loss = jnp.sum(w * nll) / jnp.sum(w)

    typ_logits = outputs["category_type_logits"].astype(jnp.float32)
    typ_labels = targets["category_type_labels"]
    logp_t = jax.nn.log_softmax(typ_logits, axis=-1)
    typ_loss = -jnp.mean(jnp.take_along_axis(logp_t, typ_labels[:, None], axis=-1))

    z = outputs["attribute_preds"].astype(jnp.float32)
    t = targets["attribute_targets"].astype(jnp.float32)
    attr_loss = jnp.mean(jnp.maximum(z, 0.0) - z * t + jnp.log1p(jnp.exp(-jnp.abs(z))))

    p = outputs["compatibility_score"].astype(jnp.float32)
    ct = targets["compatibility_targets"].astype(jnp.float32)
    comp_loss = jnp.mean((p - ct) ** 2)

    total = w_cat * cat_loss + w_typ * typ_loss + w_attr * attr_loss + w_comp * comp_loss
    return total, {"total_loss": total, "category_loss": cat_loss,
                   "category_type_loss": typ_loss, "attribute_loss": attr_loss,
                   "compatibility_loss": comp_loss}


# ----------------------------------------------------------------------------
if __name__ == "__main__":
    key = jax.random.PRNGKey(0)
    ks = jax.random.split(key, 8)

    B, nC, nT, nA = 8, 46, 3, 50
    outputs = {
        "category_logits": jax.random.normal(ks[0], (B, nC), jnp.float32),
        "category_type_logits": jax.random.normal(ks[1], (B, nT), jnp.float32),
        "attribute_preds": jax.random.normal(ks[2], (B, nA), jnp.float32),
        "compatibility_score": jax.nn.sigmoid(
            jax.random.normal(ks[3], (B, 1), jnp.float32)),
    }
    targets = {
        "category_labels": jax.random.randint(ks[4], (B,), 0, nC),
        "category_type_labels": jax.random.randint(ks[5], (B,), 0, nT),
        "attribute_targets": jax.random.bernoulli(ks[6], 0.3, (B, nA)).astype(jnp.float32),
        "compatibility_targets": jax.random.uniform(ks[7], (B, 1), jnp.float32),
    }

    total_loss, loss_details = fashion_multitask_loss(outputs, targets)
    total_loss = jax.block_until_ready(total_loss)

    ref_total, ref_details = _reference_loss(outputs, targets)
    assert jnp.allclose(total_loss, ref_total, rtol=2e-4, atol=1e-5), (
        float(total_loss), float(ref_total))
    for name in ref_details:
        assert jnp.allclose(loss_details[name], ref_details[name],
                            rtol=2e-4, atol=1e-5), (
            name, float(loss_details[name]), float(ref_details[name]))

    print("KERNEL_OK")
</pallas_src>

<mosaic_0001>
module attributes {stable_mosaic.version = 11 : i64} {
  func.func @_multitask_loss_kernel(%arg0: i32, %arg1: i32, %arg2: memref<8x46xf32, #tpu.memory_space<vmem>>, %arg3: memref<8x3xf32, #tpu.memory_space<vmem>>, %arg4: memref<8x50xf32, #tpu.memory_space<vmem>>, %arg5: memref<8x50xf32, #tpu.memory_space<vmem>>, %arg6: memref<8x4xf32, #tpu.memory_space<vmem>>, %arg7: memref<1x46xf32, #tpu.memory_space<vmem>>, %arg8: memref<1x128xf32, #tpu.memory_space<vmem>>, %arg9: memref<1x128xf32, #tpu.memory_space<vmem>>) attributes {dimension_semantics = [#tpu.dimension_semantics<parallel>, #tpu.dimension_semantics<arbitrary>], iteration_bounds = array<i64: 1, 1>, scalar_prefetch = 0 : i64, scratch_operands = 1 : i64, tpu.core_type = #tpu.core_type<tc>, window_params = [{transform_indices = @transform_0, window_bounds = array<i64: 8, 46>}, {transform_indices = @transform_1, window_bounds = array<i64: 8, 3>}, {transform_indices = @transform_2, window_bounds = array<i64: 8, 50>}, {transform_indices = @transform_3, window_bounds = array<i64: 8, 50>}, {transform_indices = @transform_4, window_bounds = array<i64: 8, 4>}, {pipeline_mode = #tpu.pipeline_mode<synchronous>, transform_indices = @transform_5, window_bounds = array<i64: 1, 46>}, {transform_indices = @transform_6, window_bounds = array<i64: 1, 128>}]} {
    %c0_i32 = arith.constant 0 : i32
    %0 = arith.cmpi eq, %arg1, %c0_i32 : i32
    %1 = arith.extui %0 : i1 to i32
    %c0_i32_0 = arith.constant 0 : i32
    %2 = arith.cmpi ne, %1, %c0_i32_0 : i32
    scf.if %2 {
      %cst_45 = arith.constant 0.000000e+00 : f32
      %154 = vector.broadcast %cst_45 : f32 to vector<1x128xf32>
      %c0_46 = arith.constant 0 : index
      %c0_47 = arith.constant 0 : index
      %155 = vector.load %arg9[%c0_46, %c0_47] : memref<1x128xf32, #tpu.memory_space<vmem>>, vector<1x128xf32>
      tpu.vector_store %arg9[%c0_46, %c0_47], %154 {strides = array<i32>} : memref<1x128xf32, #tpu.memory_space<vmem>>, vector<1x128xf32>,
    } else {
    }
    %c1_i32 = arith.constant 1 : i32
    %3 = arith.muli %arg0, %c1_i32 : i32
    %4 = arith.addi %3, %arg1 : i32
    %c8_i32 = arith.constant 8 : i32
    %5 = arith.muli %4, %c8_i32 : i32
    %6 = tpu.iota {dimensions = array<i32: 0>} : vector<8x1xi32>
    %7 = vector.broadcast %5 : i32 to vector<8x1xi32>
    %8 = arith.addi %7, %6 : vector<8x1xi32>
    %c8_i32_1 = arith.constant 8 : i32
    %9 = vector.broadcast %c8_i32_1 : i32 to vector<8x1xi32>
    %10 = arith.cmpi slt, %8, %9 : vector<8x1xi32>
    %c0 = arith.constant 0 : index
    %c0_2 = arith.constant 0 : index
    %11 = vector.load %arg6[%c0, %c0_2] : memref<8x4xf32, #tpu.memory_space<vmem>>, vector<8x4xf32>
    %12 = vector.extract_strided_slice %11 {offsets = [0, 0], sizes = [8, 1], strides = [1, 1]} : vector<8x4xf32> to vector<8x1xf32>
    %13 = arith.fptosi %12 : vector<8x1xf32> to vector<8x1xi32>
    %14 = vector.extract_strided_slice %11 {offsets = [0, 1], sizes = [8, 1], strides = [1, 1]} : vector<8x4xf32> to vector<8x1xf32>
    %15 = arith.fptosi %14 : vector<8x1xf32> to vector<8x1xi32>
    %16 = vector.extract_strided_slice %11 {offsets = [0, 2], sizes = [8, 1], strides = [1, 1]} : vector<8x4xf32> to vector<8x1xf32>
    %17 = vector.extract_strided_slice %11 {offsets = [0, 3], sizes = [8, 1], strides = [1, 1]} : vector<8x4xf32> to vector<8x1xf32>
    %c0_3 = arith.constant 0 : index
    %c0_4 = arith.constant 0 : index
    %18 = vector.load %arg2[%c0_3, %c0_4] : memref<8x46xf32, #tpu.memory_space<vmem>>, vector<8x46xf32>
    %19 = tpu.iota {dimensions = array<i32: 1>} : vector<8x46xi32>
    %cst = arith.constant dense<0xFF800000> : vector<8xf32>
    %20 = vector.multi_reduction <maximumf>, %18, %cst [1] : vector<8x46xf32> to vector<8xf32>
    %21 = vector.shape_cast %20 : vector<8xf32> to vector<8x1xf32>
    %22 = vector.broadcast %21 : vector<8x1xf32> to vector<8x46xf32>
    %23 = arith.subf %18, %22 : vector<8x46xf32>
    %24 = math.exp %23 : vector<8x46xf32>
    %cst_5 = arith.constant dense<0.000000e+00> : vector<8xf32>
    %25 = vector.multi_reduction <add>, %24, %cst_5 [1] : vector<8x46xf32> to vector<8xf32>
    %26 = vector.shape_cast %25 : vector<8xf32> to vector<8x1xf32>
    %27 = math.log %26 : vector<8x1xf32>
    %28 = arith.addf %21, %27 : vector<8x1xf32>
    %29 = vector.broadcast %13 : vector<8x1xi32> to vector<8x46xi32>
    %30 = arith.cmpi eq, %19, %29 : vector<8x46xi32>
    %31 = arith.extui %30 : vector<8x46xi1> to vector<8x46xi32>
    %32 = arith.sitofp %31 : vector<8x46xi32> to vector<8x46xf32>
    %33 = arith.mulf %18, %32 : vector<8x46xf32>
    %cst_6 = arith.constant dense<0.000000e+00> : vector<8xf32>
    %34 = vector.multi_reduction <add>, %33, %cst_6 [1] : vector<8x46xf32> to vector<8xf32>
    %35 = vector.shape_cast %34 : vector<8xf32> to vector<8x1xf32>
    %36 = arith.subf %28, %35 : vector<8x1xf32>
    %c0_7 = arith.constant 0 : index
    %c0_8 = arith.constant 0 : index
    %37 = vector.load %arg7[%c0_7, %c0_8] : memref<1x46xf32, #tpu.memory_space<vmem>>, vector<1x46xf32>
    %38 = vector.broadcast %37 : vector<1x46xf32> to vector<8x46xf32>
    %39 = arith.mulf %32, %38 : vector<8x46xf32>
    %cst_9 = arith.constant dense<0.000000e+00> : vector<8xf32>
    %40 = vector.multi_reduction <add>, %39, %cst_9 [1] : vector<8x46xf32> to vector<8xf32>
    %41 = vector.shape_cast %40 : vector<8xf32> to vector<8x1xf32>
    %42 = arith.mulf %41, %36 : vector<8x1xf32>
    %cst_10 = arith.constant 0.000000e+00 : f32
    %43 = vector.broadcast %cst_10 : f32 to vector<8x1xf32>
    %44 = arith.select %10, %42, %43 : vector<8x1xi1>, vector<8x1xf32>
    %cst_11 = arith.constant 0.000000e+00 : f32
    %45 = vector.broadcast %cst_11 : f32 to vector<8x1xf32>
    %46 = arith.select %10, %41, %45 : vector<8x1xi1>, vector<8x1xf32>
    %c0_12 = arith.constant 0 : index
    %c0_13 = arith.constant 0 : index
    %47 = vector.load %arg3[%c0_12, %c0_13] : memref<8x3xf32, #tpu.memory_space<vmem>>, vector<8x3xf32>
    %48 = tpu.iota {dimensions = array<i32: 1>} : vector<8x3xi32>
    %cst_14 = arith.constant dense<0xFF800000> : vector<8xf32>
    %49 = vector.multi_reduction <maximumf>, %47, %cst_14 [1] : vector<8x3xf32> to vector<8xf32>
    %50 = vector.shape_cast %49 : vector<8xf32> to vector<8x1xf32>
    %51 = vector.broadcast %50 : vector<8x1xf32> to vector<8x3xf32>
    %52 = arith.subf %47, %51 : vector<8x3xf32>
    %53 = math.exp %52 : vector<8x3xf32>
    %cst_15 = arith.constant dense<0.000000e+00> : vector<8xf32>
    %54 = vector.multi_reduction <add>, %53, %cst_15 [1] : vector<8x3xf32> to vector<8xf32>
    %55 = vector.shape_cast %54 : vector<8xf32> to vector<8x1xf32>
    %56 = math.log %55 : vector<8x1xf32>
    %57 = arith.addf %50, %56 : vector<8x1xf32>
    %58 = vector.broadcast %15 : vector<8x1xi32> to vector<8x3xi32>
    %59 = arith.cmpi eq, %48, %58 : vector<8x3xi32>
    %60 = arith.extui %59 : vector<8x3xi1> to vector<8x3xi32>
    %61 = arith.sitofp %60 : vector<8x3xi32> to vector<8x3xf32>
    %62 = arith.mulf %47, %61 : vector<8x3xf32>
    %cst_16 = arith.constant dense<0.000000e+00> : vector<8xf32>
    %63 = vector.multi_reduction <add>, %62, %cst_16 [1] : vector<8x3xf32> to vector<8xf32>
    %64 = vector.shape_cast %63 : vector<8xf32> to vector<8x1xf32>
    %65 = arith.subf %57, %64 : vector<8x1xf32>
    %cst_17 = arith.constant 0.000000e+00 : f32
    %66 = vector.broadcast %cst_17 : f32 to vector<8x1xf32>
    %67 = arith.select %10, %65, %66 : vector<8x1xi1>, vector<8x1xf32>
    %c0_18 = arith.constant 0 : index
    %c0_19 = arith.constant 0 : index
    %68 = vector.load %arg4[%c0_18, %c0_19] : memref<8x50xf32, #tpu.memory_space<vmem>>, vector<8x50xf32>
    %c0_20 = arith.constant 0 : index
    %c0_21 = arith.constant 0 : index
    %69 = vector.load %arg5[%c0_20, %c0_21] : memref<8x50xf32, #tpu.memory_space<vmem>>, vector<8x50xf32>
    %cst_22 = arith.constant 0.000000e+00 : f32
    %70 = vector.broadcast %cst_22 : f32 to vector<8x50xf32>
    %71 = arith.maximumf %68, %70 : vector<8x50xf32>
    %72 = arith.mulf %68, %69 : vector<8x50xf32>
    %73 = arith.subf %71, %72 : vector<8x50xf32>
    %74 = math.absf %68 : vector<8x50xf32>
    %cst_23 = arith.constant 0.000000e+00 : f32
    %75 = vector.broadcast %cst_23 : f32 to vector<8x50xf32>
    %76 = arith.subf %75, %74 : vector<8x50xf32>
    %77 = math.exp %76 : vector<8x50xf32>
    %78 = math.log1p %77 : vector<8x50xf32>
    %79 = arith.addf %73, %78 : vector<8x50xf32>
    %cst_24 = arith.constant dense<0.000000e+00> : vector<8xf32>
    %80 = vector.multi_reduction <add>, %79, %cst_24 [1] : vector<8x50xf32> to vector<8xf32>
    %81 = vector.shape_cast %80 : vector<8xf32> to vector<8x1xf32>
    %cst_25 = arith.constant 0.000000e+00 : f32
    %82 = vector.broadcast %cst_25 : f32 to vector<8x1xf32>
    %83 = arith.select %10, %81, %82 : vector<8x1xi1>, vector<8x1xf32>
    %84 = arith.subf %16, %17 : vector<8x1xf32>
    %85 = arith.mulf %84, %84 : vector<8x1xf32>
    %cst_26 = arith.constant 0.000000e+00 : f32
    %86 = vector.broadcast %cst_26 : f32 to vector<8x1xf32>
    %87 = arith.select %10, %85, %86 : vector<8x1xi1>, vector<8x1xf32>
    %88 = tpu.iota {dimensions = array<i32: 1>} : vector<1x128xi32>
    %c0_27 = arith.constant 0 : index
    %c0_28 = arith.constant 0 : index
    %89 = vector.load %arg9[%c0_27, %c0_28] : memref<1x128xf32, #tpu.memory_space<vmem>>, vector<1x128xf32>
    %c0_i32_29 = arith.constant 0 : i32
    %90 = vector.broadcast %c0_i32_29 : i32 to vector<1x128xi32>
    %91 = arith.cmpi eq, %88, %90 : vector<1x128xi32>
    %92 = vector.shape_cast %44 : vector<8x1xf32> to vector<1x8x1xf32>
    %cst_30 = arith.constant dense<0.000000e+00> : vector<1xf32>
    %93 = vector.multi_reduction <add>, %92, %cst_30 [1, 2] : vector<1x8x1xf32> to vector<1xf32>
    %94 = vector.shape_cast %93 : vector<1xf32> to vector<1x1x1xf32>
    %95 = vector.extract %94[0, 0, 0] : f32 from vector<1x1x1xf32>
    %96 = vector.broadcast %95 : f32 to vector<1x1xf32>
    %cst_31 = arith.constant 0.000000e+00 : f32
    %97 = vector.shape_cast %96 : vector<1x1xf32> to vector<1x1xf32>
    %98 = vector.broadcast %97 : vector<1x1xf32> to vector<1x128xf32>
    %99 = vector.broadcast %cst_31 : f32 to vector<1x128xf32>
    %100 = arith.select %91, %98, %99 : vector<1x128xi1>, vector<1x128xf32>
    %c1_i32_32 = arith.constant 1 : i32
    %101 = vector.broadcast %c1_i32_32 : i32 to vector<1x128xi32>
    %102 = arith.cmpi eq, %88, %101 : vector<1x128xi32>
    %103 = vector.shape_cast %46 : vector<8x1xf32> to vector<1x8x1xf32>
    %cst_33 = arith.constant dense<0.000000e+00> : vector<1xf32>
    %104 = vector.multi_reduction <add>, %103, %cst_33 [1, 2] : vector<1x8x1xf32> to vector<1xf32>
    %105 = vector.shape_cast %104 : vector<1xf32> to vector<1x1x1xf32>
    %106 = vector.extract %105[0, 0, 0] : f32 from vector<1x1x1xf32>
    %107 = vector.broadcast %106 : f32 to vector<1x1xf32>
    %cst_34 = arith.constant 0.000000e+00 : f32
    %108 = vector.shape_cast %107 : vector<1x1xf32> to vector<1x1xf32>
    %109 = vector.broadcast %108 : vector<1x1xf32> to vector<1x128xf32>
    %110 = vector.broadcast %cst_34 : f32 to vector<1x128xf32>
    %111 = arith.select %102, %109, %110 : vector<1x128xi1>, vector<1x128xf32>
    %112 = arith.addf %100, %111 : vector<1x128xf32>
    %c2_i32 = arith.constant 2 : i32
    %113 = vector.broadcast %c2_i32 : i32 to vector<1x128xi32>
    %114 = arith.cmpi eq, %88, %113 : vector<1x128xi32>
    %115 = vector.shape_cast %67 : vector<8x1xf32> to vector<1x8x1xf32>
    %cst_35 = arith.constant dense<0.000000e+00> : vector<1xf32>
    %116 = vector.multi_reduction <add>, %115, %cst_35 [1, 2] : vector<1x8x1xf32> to vector<1xf32>
    %117 = vector.shape_cast %116 : vector<1xf32> to vector<1x1x1xf32>
    %118 = vector.extract %117[0, 0, 0] : f32 from vector<1x1x1xf32>
    %119 = vector.broadcast %118 : f32 to vector<1x1xf32>
    %cst_36 = arith.constant 0.000000e+00 : f32
    %120 = vector.shape_cast %119 : vector<1x1xf32> to vector<1x1xf32>
    %121 = vector.broadcast %120 : vector<1x1xf32> to vector<1x128xf32>
    %122 = vector.broadcast %cst_36 : f32 to vector<1x128xf32>
    %123 = arith.select %114, %121, %122 : vector<1x128xi1>, vector<1x128xf32>
    %124 = arith.addf %112, %123 : vector<1x128xf32>
    %c3_i32 = arith.constant 3 : i32
    %125 = vector.broadcast %c3_i32 : i32 to vector<1x128xi32>
    %126 = arith.cmpi eq, %88, %125 : vector<1x128xi32>
    %127 = vector.shape_cast %83 : vector<8x1xf32> to vector<1x8x1xf32>
    %cst_37 = arith.constant dense<0.000000e+00> : vector<1xf32>
    %128 = vector.multi_reduction <add>, %127, %cst_37 [1, 2] : vector<1x8x1xf32> to vector<1xf32>
    %129 = vector.shape_cast %128 : vector<1xf32> to vector<1x1x1xf32>
    %130 = vector.extract %129[0, 0, 0] : f32 from vector<1x1x1xf32>
    %131 = vector.broadcast %130 : f32 to vector<1x1xf32>
    %cst_38 = arith.constant 0.000000e+00 : f32
    %132 = vector.shape_cast %131 : vector<1x1xf32> to vector<1x1xf32>
    %133 = vector.broadcast %132 : vector<1x1xf32> to vector<1x128xf32>
    %134 = vector.broadcast %cst_38 : f32 to vector<1x128xf32>
    %135 = arith.select %126, %133, %134 : vector<1x128xi1>, vector<1x128xf32>
    %136 = arith.addf %124, %135 : vector<1x128xf32>
    %c4_i32 = arith.constant 4 : i32
    %137 = vector.broadcast %c4_i32 : i32 to vector<1x128xi32>
    %138 = arith.cmpi eq, %88, %137 : vector<1x128xi32>
    %139 = vector.shape_cast %87 : vector<8x1xf32> to vector<1x8x1xf32>
    %cst_39 = arith.constant dense<0.000000e+00> : vector<1xf32>
    %140 = vector.multi_reduction <add>, %139, %cst_39 [1, 2] : vector<1x8x1xf32> to vector<1xf32>
    %141 = vector.shape_cast %140 : vector<1xf32> to vector<1x1x1xf32>
    %142 = vector.extract %141[0, 0, 0] : f32 from vector<1x1x1xf32>
    %143 = vector.broadcast %142 : f32 to vector<1x1xf32>
    %cst_40 = arith.constant 0.000000e+00 : f32
    %144 = vector.shape_cast %143 : vector<1x1xf32> to vector<1x1xf32>
    %145 = vector.broadcast %144 : vector<1x1xf32> to vector<1x128xf32>
    %146 = vector.broadcast %cst_40 : f32 to vector<1x128xf32>
    %147 = arith.select %138, %145, %146 : vector<1x128xi1>, vector<1x128xf32>
    %148 = arith.addf %136, %147 : vector<1x128xf32>
    %149 = arith.addf %89, %148 : vector<1x128xf32>
    %c0_41 = arith.constant 0 : index
    %c0_42 = arith.constant 0 : index
    %150 = vector.load %arg9[%c0_41, %c0_42] : memref<1x128xf32, #tpu.memory_space<vmem>>, vector<1x128xf32>
    tpu.vector_store %arg9[%c0_41, %c0_42], %149 {strides = array<i32>} : memref<1x128xf32, #tpu.memory_space<vmem>>, vector<1x128xf32>,
    %c0_i32_43 = arith.constant 0 : i32
    %151 = arith.cmpi eq, %arg1, %c0_i32_43 : i32
    %152 = arith.extui %151 : i1 to i32
    %c0_i32_44 = arith.constant 0 : i32
    %153 = arith.cmpi ne, %152, %c0_i32_44 : i32
    scf.if %153 {
      %c0_45 = arith.constant 0 : index
      %c0_46 = arith.constant 0 : index
      %154 = vector.load %arg9[%c0_45, %c0_46] : memref<1x128xf32, #tpu.memory_space<vmem>>, vector<1x128xf32>
      %c0_47 = arith.constant 0 : index
      %c0_48 = arith.constant 0 : index
      %155 = vector.load %arg8[%c0_47, %c0_48] : memref<1x128xf32, #tpu.memory_space<vmem>>, vector<1x128xf32>
      tpu.vector_store %arg8[%c0_47, %c0_48], %154 {strides = array<i32>} : memref<1x128xf32, #tpu.memory_space<vmem>>, vector<1x128xf32>,
    } else {
    }
    return
  }
  func.func @transform_0(%arg0: i32, %arg1: i32) -> (i32, i32) {
    %c1_i32 = arith.constant 1 : i32
    %0 = arith.muli %arg0, %c1_i32 : i32
    %1 = arith.addi %0, %arg1 : i32
    %c0_i32 = arith.constant 0 : i32
    %2 = arith.minsi %1, %c0_i32 : i32
    %c0_i32_0 = arith.constant 0 : i32
    %c0_i32_1 = arith.constant 0 : i32
    return %2, %c0_i32_0 : i32, i32
  }
  func.func @transform_1(%arg0: i32, %arg1: i32) -> (i32, i32) {
    %c1_i32 = arith.constant 1 : i32
    %0 = arith.muli %arg0, %c1_i32 : i32
    %1 = arith.addi %0, %arg1 : i32
    %c0_i32 = arith.constant 0 : i32
    %2 = arith.minsi %1, %c0_i32 : i32
    %c0_i32_0 = arith.constant 0 : i32
    %c0_i32_1 = arith.constant 0 : i32
    return %2, %c0_i32_0 : i32, i32
  }
  func.func @transform_2(%arg0: i32, %arg1: i32) -> (i32, i32) {
    %c1_i32 = arith.constant 1 : i32
    %0 = arith.muli %arg0, %c1_i32 : i32
    %1 = arith.addi %0, %arg1 : i32
    %c0_i32 = arith.constant 0 : i32
    %2 = arith.minsi %1, %c0_i32 : i32
    %c0_i32_0 = arith.constant 0 : i32
    %c0_i32_1 = arith.constant 0 : i32
    return %2, %c0_i32_0 : i32, i32
  }
  func.func @transform_3(%arg0: i32, %arg1: i32) -> (i32, i32) {
    %c1_i32 = arith.constant 1 : i32
    %0 = arith.muli %arg0, %c1_i32 : i32
    %1 = arith.addi %0, %arg1 : i32
    %c0_i32 = arith.constant 0 : i32
    %2 = arith.minsi %1, %c0_i32 : i32
    %c0_i32_0 = arith.constant 0 : i32
    %c0_i32_1 = arith.constant 0 : i32
    return %2, %c0_i32_0 : i32, i32
  }
  func.func @transform_4(%arg0: i32, %arg1: i32) -> (i32, i32) {
    %c1_i32 = arith.constant 1 : i32
    %0 = arith.muli %arg0, %c1_i32 : i32
    %1 = arith.addi %0, %arg1 : i32
    %c0_i32 = arith.constant 0 : i32
    %2 = arith.minsi %1, %c0_i32 : i32
    %c0_i32_0 = arith.constant 0 : i32
    %c0_i32_1 = arith.constant 0 : i32
    return %2, %c0_i32_0 : i32, i32
  }
  func.func @transform_5(%arg0: i32, %arg1: i32) -> (i32, i32) {
    %c0_i32 = arith.constant 0 : i32
    %c0_i32_0 = arith.constant 0 : i32
    %c0_i32_1 = arith.constant 0 : i32
    return %c0_i32, %c0_i32_0 : i32, i32
  }
  func.func @transform_6(%arg0: i32, %arg1: i32) -> (i32, i32) {
    %c0_i32 = arith.constant 0 : i32
    %c0_i32_0 = arith.constant 0 : i32
    return %arg0, %c0_i32 : i32, i32
  }
}

</mosaic_0001>

<llo_original>
// kernel: tpu_custom_call.1
$region0: #{tpu_custom_call.1}
  #allocation0 [shape = 'u32[]', space=smem, size = 0x4, offset = 0x4, fixed_abs, tag = 'smem constant byte address 0x4 - core index']
  #allocation1 [shape = 'u32[144,128]{1,0:T(1,128)}', space=vmem, size = 0x12000, scoped, tag = 'internal scratch']
  #allocation2 [shape = 'f32[1,128]{1,0:T(1,128)}', space=vmem, size = 0x200, scoped, tag = 'scratch operand']
  %s0 = inlined_call_operand.vmem [shape: f32[8,46], index: 0, kind: input, shape index: {}]
  %s1 = inlined_call_operand.vmem [shape: f32[8,3], index: 1, kind: input, shape index: {}]
  %s2 = inlined_call_operand.vmem [shape: f32[8,50], index: 2, kind: input, shape index: {}]
  %s3 = inlined_call_operand.vmem [shape: f32[8,50], index: 3, kind: input, shape index: {}]
  %s4 = inlined_call_operand.vmem [shape: f32[8,4], index: 4, kind: input, shape index: {}]
  %s5 = inlined_call_operand.vmem [shape: f32[1,46], index: 5, kind: input, shape index: {}]
  %s6 = inlined_call_operand.hbm [shape: f32[1,128], index: 6, kind: output, shape index: {}]
  %s7 = sld [smem:[#allocation0]]
  $region42: #{tpu_custom_call.1} parent=0
    _
  %s9 = ssub.s32 1, %s7
  %s10 = scalar_select 0, %s9, %s7
  $region1: #{tpu_custom_call.1} parent=0
    #allocation3 [shape = 'u8[512]{0}', space=vmem, size = 0x400, scoped, tag = 'output window, operand 0, single buffered']
    #allocation4 [shape = 's32[1]{0}', space=sflag, size = 0x4, scoped, tag = 'scoped memory for tpu_custom_call.1']
    %11 = vsyncpa [#allocation4], 0
    // Predicated region
    $region2: #{tpu_custom_call.1} parent=1 // pred_check
      _
    $region3: #{tpu_custom_call.1} parent=1 // pred_check_branch
      %13 = sbr.rel (0) target = $region5
    $region4: #{tpu_custom_call.1} parent=1 // pred_region
      %s14 = sadd.s32 0, 0
      %p15 = scmp.lt.s32.totalorder %s14, 0
      %s16 = scalar_select %p15, %s14, 0
      %p17 = scmp.lt.s32.totalorder %s16, 0
      %s18 = scalar_select %p17, %s16, 0
      %s19 = smul.addr %s18, 8
      %s20 = scalar_lea.vmem %s0, %s19
      %s21 = sadd.s32 0, 0
      %p22 = scmp.lt.s32.totalorder %s21, 0
      %s23 = scalar_select %p22, %s21, 0
    $region5: #{tpu_custom_call.1} parent=1 // pred_fallthru
      _
    // Predicated region
    $region6: #{tpu_custom_call.1} parent=1 // pred_check
      _
    $region7: #{tpu_custom_call.1} parent=1 // pred_check_branch
      %25 = sbr.rel (0) target = $region9
    $region8: #{tpu_custom_call.1} parent=1 // pred_region
      %s26 = sadd.s32 0, 0
      %p27 = scmp.lt.s32.totalorder %s26, 0
      %s28 = scalar_select %p27, %s26, 0
      %p29 = scmp.lt.s32.totalorder %s28, 0
      %s30 = scalar_select %p29, %s28, 0
      %s31 = smul.addr %s30, 8
      %s32 = scalar_lea.vmem %s1, %s31
      %s33 = sadd.s32 0, 0
      %p34 = scmp.lt.s32.totalorder %s33, 0
      %s35 = scalar_select %p34, %s33, 0
    $region9: #{tpu_custom_call.1} parent=1 // pred_fallthru
      _
    // Predicated region
    $region10: #{tpu_custom_call.1} parent=1 // pred_check
      _
    $region11: #{tpu_custom_call.1} parent=1 // pred_check_branch
      %37 = sbr.rel (0) target = $region13
    $region12: #{tpu_custom_call.1} parent=1 // pred_region
      %s38 = sadd.s32 0, 0
      %p39 = scmp.lt.s32.totalorder %s38, 0
      %s40 = scalar_select %p39, %s38, 0
      %p41 = scmp.lt.s32.totalorder %s40, 0
      %s42 = scalar_select %p41, %s40, 0
      %s43 = smul.addr %s42, 8
      %s44 = scalar_lea.vmem %s2, %s43
      %s45 = sadd.s32 0, 0
      %p46 = scmp.lt.s32.totalorder %s45, 0
      %s47 = scalar_select %p46, %s45, 0
    $region13: #{tpu_custom_call.1} parent=1 // pred_fallthru
      _
    // Predicated region
    $region14: #{tpu_custom_call.1} parent=1 // pred_check
      _
    $region15: #{tpu_custom_call.1} parent=1 // pred_check_branch
      %49 = sbr.rel (0) target = $region17
    $region16: #{tpu_custom_call.1} parent=1 // pred_region
      %s50 = sadd.s32 0, 0
      %p51 = scmp.lt.s32.totalorder %s50, 0
      %s52 = scalar_select %p51, %s50, 0
      %p53 = scmp.lt.s32.totalorder %s52, 0
      %s54 = scalar_select %p53, %s52, 0
      %s55 = smul.addr %s54, 8
      %s56 = scalar_lea.vmem %s3, %s55
      %s57 = sadd.s32 0, 0
      %p58 = scmp.lt.s32.totalorder %s57, 0
      %s59 = scalar_select %p58, %s57, 0
    $region17: #{tpu_custom_call.1} parent=1 // pred_fallthru
      _
    // Predicated region
    $region18: #{tpu_custom_call.1} parent=1 // pred_check
      _
    $region19: #{tpu_custom_call.1} parent=1 // pred_check_branch
      %61 = sbr.rel (0) target = $region21
    $region20: #{tpu_custom_call.1} parent=1 // pred_region
      %s62 = sadd.s32 0, 0
      %p63 = scmp.lt.s32.totalorder %s62, 0
      %s64 = scalar_select %p63, %s62, 0
      %p65 = scmp.lt.s32.totalorder %s64, 0
      %s66 = scalar_select %p65, %s64, 0
      %s67 = smul.addr %s66, 8
      %s68 = scalar_lea.vmem %s4, %s67
      %s69 = sadd.s32 0, 0
      %p70 = scmp.lt.s32.totalorder %s69, 0
      %s71 = scalar_select %p70, %s69, 0
    $region21: #{tpu_custom_call.1} parent=1 // pred_fallthru
      _
    // Predicated region
    $region22: #{tpu_custom_call.1} parent=1 // pred_check
      _
    $region23: #{tpu_custom_call.1} parent=1 // pred_check_branch
      %73 = sbr.rel (0) target = $region25
    $region24: #{tpu_custom_call.1} parent=1 // pred_region
      _
    $region25: #{tpu_custom_call.1} parent=1 // pred_fallthru
      _
    %s74 = sadd.s32 0, 0
    %p75 = scmp.lt.s32.totalorder %s74, 0
    %s76 = scalar_select %p75, %s74, 0
    %p77 = scmp.lt.s32.totalorder %s76, 0
    %s78 = scalar_select %p77, %s76, 0
    %s79 = smul.addr %s78, 8
    %s80 = scalar_lea.vmem %s0, %s79
    %s81 = sadd.s32 0, 0
    %p82 = scmp.lt.s32.totalorder %s81, 0
    %s83 = scalar_select %p82, %s81, 0
    %p84 = scmp.lt.s32.totalorder %s83, 0
    %s85 = scalar_select %p84, %s83, 0
    %s86 = smul.addr %s85, 8
    %s87 = scalar_lea.vmem %s1, %s86
    %s88 = sadd.s32 0, 0
    %p89 = scmp.lt.s32.totalorder %s88, 0
    %s90 = scalar_select %p89, %s88, 0
    %p91 = scmp.lt.s32.totalorder %s90, 0
    %s92 = scalar_select %p91, %s90, 0
    %s93 = smul.addr %s92, 8
    %s94 = scalar_lea.vmem %s2, %s93
    %s95 = sadd.s32 0, 0
    %p96 = scmp.lt.s32.totalorder %s95, 0
    %s97 = scalar_select %p96, %s95, 0
    %p98 = scmp.lt.s32.totalorder %s97, 0
    %s99 = scalar_select %p98, %s97, 0
    %s100 = smul.addr %s99, 8
    %s101 = scalar_lea.vmem %s3, %s100
    %s102 = sadd.s32 0, 0
    %p103 = scmp.lt.s32.totalorder %s102, 0
    %s104 = scalar_select %p103, %s102, 0
    %p105 = scmp.lt.s32.totalorder %s104, 0
    %s106 = scalar_select %p105, %s104, 0
    %s107 = smul.addr %s106, 8
    %s108 = scalar_lea.vmem %s4, %s107
    %s109 = sadd.s32 0, 0
    %p110 = scmp.lt.s32.totalorder %s109, 0
    %s111 = scalar_select %p110, %s109, 0
    %p112 = scmp.lt.s32.totalorder %s111, 0
    %s113 = scalar_select %p112, %s111, 0
    %s114 = smul.addr %s113, 8
    %s115 = scalar_lea.vmem %s0, %s114
    %s116 = sadd.s32 0, 0
    %p117 = scmp.lt.s32.totalorder %s116, 0
    %s118 = scalar_select %p117, %s116, 0
    %s119 = sadd.s32 0, 0
    %p120 = scmp.lt.s32.totalorder %s119, 0
    %s121 = scalar_select %p120, %s119, 0
    %p122 = scmp.lt.s32.totalorder %s121, 0
    %s123 = scalar_select %p122, %s121, 0
    %s124 = smul.addr %s123, 8
    %s125 = scalar_lea.vmem %s1, %s124
    %s126 = sadd.s32 0, 0
    %p127 = scmp.lt.s32.totalorder %s126, 0
    %s128 = scalar_select %p127, %s126, 0
    %s129 = sadd.s32 0, 0
    %p130 = scmp.lt.s32.totalorder %s129, 0
    %s131 = scalar_select %p130, %s129, 0
    %p132 = scmp.lt.s32.totalorder %s131, 0
    %s133 = scalar_select %p132, %s131, 0
    %s134 = smul.addr %s133, 8
    %s135 = scalar_lea.vmem %s2, %s134
    %s136 = sadd.s32 0, 0
    %p137 = scmp.lt.s32.totalorder %s136, 0
    %s138 = scalar_select %p137, %s136, 0
    %s139 = sadd.s32 0, 0
    %p140 = scmp.lt.s32.totalorder %s139, 0
    %s141 = scalar_select %p140, %s139, 0
    %p142 = scmp.lt.s32.totalorder %s141, 0
    %s143 = scalar_select %p142, %s141, 0
    %s144 = smul.addr %s143, 8
    %s145 = scalar_lea.vmem %s3, %s144
    %s146 = sadd.s32 0, 0
    %p147 = scmp.lt.s32.totalorder %s146, 0
    %s148 = scalar_select %p147, %s146, 0
    %s149 = sadd.s32 0, 0
    %p150 = scmp.lt.s32.totalorder %s149, 0
    %s151 = scalar_select %p150, %s149, 0
    %p152 = scmp.lt.s32.totalorder %s151, 0
    %s153 = scalar_select %p152, %s151, 0
    %s154 = smul.addr %s153, 8
    %s155 = scalar_lea.vmem %s4, %s154
    %s156 = sadd.s32 0, 0
    %p157 = scmp.lt.s32.totalorder %s156, 0
    %s158 = scalar_select %p157, %s156, 0
    %p159 = scmp.eq.s32.totalorder 0, 0
    // Predicated region
    $region26: #{tpu_custom_call.1} parent=1 // pred_check
      %p160 = pneg %p159
    $region27: #{tpu_custom_call.1} parent=1 // pred_check_branch
      %162 = sbr.rel (%p160) target = $region29
    $region28: #{tpu_custom_call.1} parent=1 // pred_region
      %163 = vst [vmem:[#allocation2] sm:$0x1] 0.0
    $region29: #{tpu_custom_call.1} parent=1 // pred_fallthru
      _
    %s164 = sadd.s32 0, 0
    %s165 = smul.u32 %s164, 8
    %v166 = vlaneseq
    %v167 = vshrl.u32 %v166, 7
    %v168 = vstv %s165
    %v169 = vadd.s32 %v168, %v167
    %vm170 = vcmp.lt.s32.totalorder %v169, 8
    %v171 = vld [vmem:[%s155] sm:$0xff]
    %v172 = vcvt.f32.s32.to.zero.pseudo %v171
    %v173 = vld [vmem:[%s115] sm:$0xff]
    %v174 = vlaneseq
    %v175 = vand.u32 %v174, 127
    %vm176 = vcmask 375808
    %v177 = vsel %vm176, %v173, -inf
    %178 = vmax.xlane.f32.xlu0 %v177
    %v179 = vpop.xlane.xlu0 %178
    %v180 = vsub.f32 %v173, %v179
    %v181 = vmul.f32 %v180, 1.442695
    %v182 = vpow.pop %v181
    %v183 = vsel %vm176, %v182, 0.0
    %184 = vadd.xlane.f32.xlu0 %v183
    %v185 = vpop.xlane.xlu0 %184
    %v186 = vlog2.pop %v185
    %v187 = vmul.f32 %v186, 0.6931472
    %v188 = vadd.f32 %v179, %v187
    %189 = vset.pattern.permute.xlu0 0
    %190 = vperm.xlu0 %189, %v172
    %v191 = vpop.permute.xlu0 %190
    %vm192 = vcmp.eq.s32.totalorder %v175, %v191
    %v193 = vsel %vm192, 1, 0
    %v194 = vcvt.s32.f32 %v193
    %v195 = vmul.f32 %v173, %v194
    %v196 = vsel %vm176, %v195, 0.0
    %197 = vadd.xlane.f32.xlu0 %v196
    %v198 = vpop.xlane.xlu0 %197
    %v199 = vsub.f32 %v188, %v198
    %v200 = vld [vmem:[%s5] sm:$0x1]
    %v202 = vlaneseq
    %v203 = vshrl.u32 %v202, 7
    %v204 = vsub.s32 0, %v203
    %v205 = vrot.slane %v200, %v204
    %v207 = vmul.f32 %v194, %v205
    %v208 = vsel %vm176, %v207, 0.0
    %209 = vadd.xlane.f32.xlu0 %v208
    %v210 = vpop.xlane.xlu0 %209
    %v211 = vmul.f32 %v210, %v199
    %v212 = vsel %vm170, %v211, 0.0
    %v213 = vsel %vm170, %v210, 0.0
    %v214 = vld [vmem:[%s125] sm:$0xff]
    %vm215 = vcmask 23552
    %v216 = vsel %vm215, %v214, -inf
    %217 = vmax.xlane.f32.xlu0 %v216
    %v218 = vpop.xlane.xlu0 %217
    %v219 = vsub.f32 %v214, %v218
    %v220 = vmul.f32 %v219, 1.442695
    %v221 = vpow.pop %v220
    %v222 = vsel %vm215, %v221, 0.0
    %223 = vadd.xlane.f32.xlu0 %v222
    %v224 = vpop.xlane.xlu0 %223
    %v225 = vlog2.pop %v224
    %v226 = vmul.f32 %v225, 0.6931472
    %v227 = vadd.f32 %v218, %v226
    %228 = vset.pattern.permute.xlu0 1
    %229 = vperm.xlu0 %228, %v172
    %v230 = vpop.permute.xlu0 %229
    %vm231 = vcmp.eq.s32.totalorder %v175, %v230
    %v232 = vsel %vm231, 1, 0
    %v233 = vcvt.s32.f32 %v232
    %v234 = vmul.f32 %v214, %v233
    %v235 = vsel %vm215, %v234, 0.0
    %236 = vadd.xlane.f32.xlu0 %v235
    %v237 = vpop.xlane.xlu0 %236
    %v238 = vsub.f32 %v227, %v237
    %v239 = vsel %vm170, %v238, 0.0
    %v240 = vld [vmem:[%s135] sm:$0xff]
    %v241 = vld [vmem:[%s145] sm:$0xff]
    %v242 = vmax.f32 %v240, 0.0
    %v243 = vmul.f32 %v240, %v241
    %v244 = vsub.f32 %v242, %v243
    %v245 = vand.u32 2147483647, %v240
    %v246 = vsub.f32 0.0, %v245
    %v247 = vmul.f32 %v246, 1.442695
    %v248 = vpow.pop %v247
    %v249 = vadd.f32 %v248, 1.0
    %v250 = vlog2.pop %v249
    %v251 = vmul.f32 %v250, 0.6931472
    %v252 = vmul.f32 -0.5, %v248
    %v253 = vadd.f32 %v252, 1.0
    %v254 = vmul.f32 %v253, %v248
    %v255 = vand.u32 2147483647, %v248
    %vm256 = vcmp.lt.f32.partialorder %v255, 0.0004427343
    %v257 = vsel %vm256, %v254, %v251
    %v258 = vadd.f32 %v244, %v257
    %vm259 = vcmask 408576
    %v260 = vsel %vm259, %v258, 0.0
    %261 = vadd.xlane.f32.xlu0 %v260
    %v262 = vpop.xlane.xlu0 %261
    %v263 = vsel %vm170, %v262, 0.0
    %265 = vrot.lane.b32.xlu0 %v171, 127
    %v266 = vpop.permute.xlu0 %265
    %v268 = vsub.f32 %v171, %v266
    %v269 = vmul.f32 %v268, %v268
    %v270 = vsel %vm170, %v269, 0.0
    %v271 = vld [vmem:[#allocation2] sm:$0x1]
    %vm272 = vcmp.eq.s32.totalorder %v175, 0
    %vm273 = vcmask 7168
    %v274 = vsel %vm273, %v212, 0.0
    %275 = vadd.xlane.f32.xlu0 %v274
    %v276 = vpop.xlane.xlu0 %275
    %v277 = vrot.slane %v276, 4
    %v278 = vadd.f32 %v276, %v277
    %v279 = vrot.slane %v278, 2
    %v280 = vadd.f32 %v278, %v279
    %v281 = vrot.slane %v280, 1
    %v282 = vadd.f32 %v280, %v281
    %s283 = vtos %v282
    %v284 = vstv %s283
    %v285 = vsel %vm272, %v284, 0.0
    %vm286 = vcmp.eq.s32.totalorder %v175, 1
    %v287 = vsel %vm273, %v213, 0.0
    %288 = vadd.xlane.f32.xlu0 %v287
    %v289 = vpop.xlane.xlu0 %288
    %v290 = vrot.slane %v289, 4
    %v291 = vadd.f32 %v289, %v290
    %v292 = vrot.slane %v291, 2
    %v293 = vadd.f32 %v291, %v292
    %v294 = vrot.slane %v293, 1
    %v295 = vadd.f32 %v293, %v294
    %s296 = vtos %v295
    %v297 = vstv %s296
    %v298 = vsel %vm286, %v297, 0.0
    %v299 = vadd.f32 %v285, %v298
    %vm300 = vcmp.eq.s32.totalorder %v175, 2
    %v301 = vsel %vm273, %v239, 0.0
    %302 = vadd.xlane.f32.xlu0 %v301
    %v303 = vpop.xlane.xlu0 %302
    %v304 = vrot.slane %v303, 4
    %v305 = vadd.f32 %v303, %v304
    %v306 = vrot.slane %v305, 2
    %v307 = vadd.f32 %v305, %v306
    %v308 = vrot.slane %v307, 1
    %v309 = vadd.f32 %v307, %v308
    %s310 = vtos %v309
    %v311 = vstv %s310
    %v312 = vsel %vm300, %v311, 0.0
    %v313 = vadd.f32 %v299, %v312
    %vm314 = vcmp.eq.s32.totalorder %v175, 3
    %v315 = vsel %vm273, %v263, 0.0
    %316 = vadd.xlane.f32.xlu0 %v315
    %v317 = vpop.xlane.xlu0 %316
    %v318 = vrot.slane %v317, 4
    %v319 = vadd.f32 %v317, %v318
    %v320 = vrot.slane %v319, 2
    %v321 = vadd.f32 %v319, %v320
    %v322 = vrot.slane %v321, 1
    %v323 = vadd.f32 %v321, %v322
    %s324 = vtos %v323
    %v325 = vstv %s324
    %v326 = vsel %vm314, %v325, 0.0
    %v327 = vadd.f32 %v313, %v326
    %vm328 = vcmp.eq.s32.totalorder %v175, 4
    %330 = vrot.lane.b32.xlu0 %v270, 126
    %v331 = vpop.permute.xlu0 %330
    %v333 = vsel %vm273, %v331, 0.0
    %334 = vadd.xlane.f32.xlu0 %v333
    %v335 = vpop.xlane.xlu0 %334
    %v336 = vrot.slane %v335, 4
    %v337 = vadd.f32 %v335, %v336
    %v338 = vrot.slane %v337, 2
    %v339 = vadd.f32 %v337, %v338
    %v340 = vrot.slane %v339, 1
    %v341 = vadd.f32 %v339, %v340
    %s342 = vtos %v341
    %v343 = vstv %s342
    %v344 = vsel %vm328, %v343, 0.0
    %v345 = vadd.f32 %v327, %v344
    %v346 = vadd.f32 %v271, %v345
    %347 = vst [vmem:[#allocation2] sm:$0x1] %v346
    // Predicated region
    $region30: #{tpu_custom_call.1} parent=1 // pred_check
      %p348 = pneg %p159
    $region31: #{tpu_custom_call.1} parent=1 // pred_check_branch
      %350 = sbr.rel (%p348) target = $region33
    $region32: #{tpu_custom_call.1} parent=1 // pred_region
      %v351 = vld [vmem:[#allocation2] sm:$0x1]
      %352 = vst [vmem:[#allocation3] sm:$0x1] %v351
    $region33: #{tpu_custom_call.1} parent=1 // pred_fallthru
      _
    // Predicated region
    $region34: #{tpu_custom_call.1} parent=1 // pred_check
      _
    $region35: #{tpu_custom_call.1} parent=1 // pred_check_branch
      %354 = sbr.rel (0) target = $region37
    $region36: #{tpu_custom_call.1} parent=1 // pred_region
      %s356 = ssub.s32 16, 16
      %357 = vsyncadd [#allocation4], %s356
      %s359 = sshll.u32 [#allocation3], 4
      %s360 = int_to_ptr.vmem [resolvable:$true] %s359
      %362 = dma.vmem_to_hbm [thread:$0]  %s360, 16, %s6, [#allocation4]
    $region37: #{tpu_custom_call.1} parent=1 // pred_fallthru
      _
    // Predicated region
    $region38: #{tpu_custom_call.1} parent=1 // pred_check
      _
    $region39: #{tpu_custom_call.1} parent=1 // pred_check_branch
      %364 = sbr.rel (0) target = $region41
    $region40: #{tpu_custom_call.1} parent=1 // pred_region
      %365 = dma.done [#allocation4], 16
    $region41: #{tpu_custom_call.1} parent=1 // pred_fallthru
      _
    %366 = vsyncpa [#allocation4], 1

</llo_original>
